<compile_context>
chip_gen: v5e
topology: v5e:2x2
jax: 0.10.0
libtpu: 0.0.40
codegen_flags: <defaults>
</compile_context>

<pallas_src>
import functools

import jax
import jax.numpy as jnp
from jax.experimental import pallas as pl
from jax.experimental.pallas import tpu as pltpu

C_IN = 8
C_OUT = 8
PAD_CT = 7      # conv_transpose padding (crops 7 px per side for kernel=1, stride=1)
K_POOL = 7      # max pool kernel size
PAD_POOL = 3    # max pool padding


def _model_kernel(x_ref, w_ref, b_ref, o_ref, *, ho, wo, min_value, max_value):
    # x_ref: (1, C_IN, L)  cropped input, spatial flattened on lanes
    # w_ref: (C_OUT, C_IN) channel-mix weight (already transposed in wrapper)
    # b_ref: (C_OUT, 1)    bias, broadcast over lanes
    # o_ref: (1, C_OUT, L) output (NCHW flattened spatial)
    l = ho * wo
    x = x_ref[0]                                           # (C_IN, L)

    # 1x1 transposed conv == per-pixel channel mixing matmul (MXU) + bias.
    y = jnp.dot(w_ref[...], x, preferred_element_type=jnp.float32) + b_ref[...]

    # clamp_min / clamp_max (clamp_max statically skipped when max_value == inf)
    if min_value != float("-inf"):
        y = jnp.maximum(y, jnp.float32(min_value))
    if max_value != float("inf"):
        y = jnp.minimum(y, jnp.float32(max_value))

    neg_inf = jnp.float32(-jnp.inf)

    def shift(v, s):
        # result[:, i] = v[:, i + s]; -inf fill outside [0, l). s is static.
        if s == 0:
            return v
        fill = jnp.full((C_OUT, abs(s)), neg_inf, jnp.float32)
        if s > 0:
            return jnp.concatenate([v[:, s:], fill], axis=1)
        return jnp.concatenate([fill, v[:, :s]], axis=1)

    # Separable 7x7 / stride-1 / pad-3 max pool with -inf padding, all in registers.
    # W direction: lane shifts by +/-1..3; mask out contributions crossing a row edge.
    col = jax.lax.broadcasted_iota(jnp.int32, (C_OUT, l), 1) % wo
    wmax = y
    for dj in range(1, PAD_POOL + 1):
        wmax = jnp.maximum(wmax, jnp.where(col < wo - dj, shift(y, dj), neg_inf))
        wmax = jnp.maximum(wmax, jnp.where(col >= dj, shift(y, -dj), neg_inf))

    # H direction: lane shifts by whole rows; the -inf fill handles the borders.
    out = wmax
    for di in range(1, PAD_POOL + 1):
        out = jnp.maximum(out, shift(wmax, di * wo))
        out = jnp.maximum(out, shift(wmax, -di * wo))

    o_ref[0] = out.astype(o_ref.dtype)


def model_forward(x_nchw, w, b, min_value=0.0, max_value=float("inf")):
    # x_nchw: (N, C_IN, H, W); w: (C_IN, C_OUT) (ConvTranspose2d weight with 1x1 squeezed); b: (C_OUT,)
    n, c, h, wdt = x_nchw.shape
    ho = h - 2 * PAD_CT
    wo = wdt - 2 * PAD_CT
    assert ho >= 1 and wo >= 1, "input spatial dims too small for padding=7 conv-transpose"
    l = ho * wo

    # The k=1,s=1,p=7 conv-transpose only crops: pre-slice so the kernel DMAs just the interior.
    x_flat = x_nchw[:, :, PAD_CT:PAD_CT + ho, PAD_CT:PAD_CT + wo].reshape(n, c, l)
    w_t = jnp.transpose(w)        # (C_OUT, C_IN): y = w_t @ x_flat (tiny, one-time)
    b2 = b.reshape(C_OUT, 1)

    kernel = functools.partial(_model_kernel, ho=ho, wo=wo,
                               min_value=float(min_value), max_value=float(max_value))
    out_flat = pl.pallas_call(
        kernel,
        out_shape=jax.ShapeDtypeStruct((n, C_OUT, l), x_nchw.dtype),
        grid_spec=pltpu.PrefetchScalarGridSpec(
            num_scalar_prefetch=0,
            grid=(n,),
            in_specs=[
                pl.BlockSpec((1, C_IN, l), lambda i: (i, 0, 0)),
                pl.BlockSpec((C_OUT, C_IN), lambda i: (0, 0)),
                pl.BlockSpec((C_OUT, 1), lambda i: (0, 0)),
            ],
            out_specs=pl.BlockSpec((1, C_OUT, l), lambda i: (i, 0, 0)),
        ),
        compiler_params=pltpu.CompilerParams(dimension_semantics=("parallel",)),
    )(x_flat, w_t, b2)
    return out_flat.reshape(n, C_OUT, ho, wo)   # free (contiguous) reshape, stays NCHW


def ref_forward(x_nchw, w, b, min_value=0.0, max_value=float("inf")):
    # pure-JAX reference (NCHW), used only as a sanity check
    y = jnp.einsum("nchw,cd->ndhw", x_nchw, w,
                   precision=jax.lax.Precision.HIGHEST) + b[None, :, None, None]
    y = y[:, :, PAD_CT:-PAD_CT, PAD_CT:-PAD_CT]
    y = jnp.clip(y, min_value, max_value)
    y = jax.lax.reduce_window(
        y, -jnp.inf, jax.lax.max,
        (1, 1, K_POOL, K_POOL), (1, 1, 1, 1),
        [(0, 0), (0, 0), (PAD_POOL, PAD_POOL), (PAD_POOL, PAD_POOL)])
    return y


if __name__ == "__main__":
    key = jax.random.PRNGKey(0)
    k1, k2, k3 = jax.random.split(key, 3)

    # batch=2, channels=8, spatial 22x22 -> conv-transpose output 8x8 -> pool output 8x8
    x = jax.random.normal(k1, (2, 8, 22, 22), dtype=jnp.float32)

    # ConvTranspose2d(8, 8, 1) params: weight (C_in, C_out, 1, 1) stored as (C_in, C_out)
    fan = 1.0 / (C_IN ** 0.5)
    w = jax.random.uniform(k2, (C_IN, C_OUT), jnp.float32, -fan, fan)
    b = jax.random.uniform(k3, (C_OUT,), jnp.float32, -fan, fan)

    out = jax.block_until_ready(model_forward(x, w, b))
    ref = jax.block_until_ready(ref_forward(x, w, b))

    assert out.shape == (2, 8, 8, 8), out.shape
    assert jnp.allclose(out, ref, rtol=1e-4, atol=1e-4), "mismatch vs pure-JAX reference"
    print("KERNEL_OK")
</pallas_src>

<mosaic_0001>
module attributes {stable_mosaic.version = 11 : i64} {
  func.func @_model_kernel(%arg0: i32, %arg1: memref<1x8x64xf32, #tpu.memory_space<vmem>>, %arg2: memref<8x8xf32, #tpu.memory_space<vmem>>, %arg3: memref<8x1xf32, #tpu.memory_space<vmem>>, %arg4: memref<1x8x64xf32, #tpu.memory_space<vmem>>) attributes {dimension_semantics = [#tpu.dimension_semantics<parallel>], iteration_bounds = array<i64: 2>, scalar_prefetch = 0 : i64, scratch_operands = 0 : i64, tpu.core_type = #tpu.core_type<tc>, window_params = [{transform_indices = @transform_0, window_bounds = array<i64: 1, 8, 64>}, {pipeline_mode = #tpu.pipeline_mode<synchronous>, transform_indices = @transform_1, window_bounds = array<i64: 8, 8>}, {pipeline_mode = #tpu.pipeline_mode<synchronous>, transform_indices = @transform_2, window_bounds = array<i64: 8, 1>}, {transform_indices = @transform_3, window_bounds = array<i64: 1, 8, 64>}]} {
    %c0 = arith.constant 0 : index
    %c0_0 = arith.constant 0 : index
    %c0_1 = arith.constant 0 : index
    %0 = vector.load %arg1[%c0, %c0_0, %c0_1] : memref<1x8x64xf32, #tpu.memory_space<vmem>>, vector<1x8x64xf32>
    %1 = vector.shape_cast %0 : vector<1x8x64xf32> to vector<8x64xf32>
    %c0_2 = arith.constant 0 : index
    %c0_3 = arith.constant 0 : index
    %2 = vector.load %arg2[%c0_2, %c0_3] : memref<8x8xf32, #tpu.memory_space<vmem>>, vector<8x8xf32>
    %cst = arith.constant dense<0.000000e+00> : vector<8x64xf32>
    %3 = tpu.matmul %2, %1, %cst {dimension_numbers = #tpu.dot_dimension_numbers<[1], [0], [0], [1], [0, 0, 1, 1], [], []>} : vector<8x8xf32>, vector<8x64xf32>, vector<8x64xf32> -> vector<8x64xf32>
    %c0_4 = arith.constant 0 : index
    %c0_5 = arith.constant 0 : index
    %4 = vector.load %arg3[%c0_4, %c0_5] : memref<8x1xf32, #tpu.memory_space<vmem>>, vector<8x1xf32>
    %5 = vector.broadcast %4 : vector<8x1xf32> to vector<8x64xf32>
    %6 = arith.addf %3, %5 : vector<8x64xf32>
    %cst_6 = arith.constant 0.000000e+00 : f32
    %7 = vector.broadcast %cst_6 : f32 to vector<8x64xf32>
    %8 = arith.maximumf %6, %7 : vector<8x64xf32>
    %9 = tpu.iota {dimensions = array<i32: 1>} : vector<8x64xi32>
    %c8_i32 = arith.constant 8 : i32
    %c0_i32 = arith.constant 0 : i32
    %10 = arith.cmpi eq, %c8_i32, %c0_i32 : i32
    %c1_i32 = arith.constant 1 : i32
    %11 = arith.select %10, %c1_i32, %c8_i32 : i32
    %12 = vector.broadcast %11 : i32 to vector<8x64xi32>
    %13 = arith.remsi %9, %12 : vector<8x64xi32>
    %c0_i32_7 = arith.constant 0 : i32
    %14 = vector.broadcast %c0_i32_7 : i32 to vector<8x64xi32>
    %15 = arith.cmpi ne, %13, %14 : vector<8x64xi32>
    %c0_i32_8 = arith.constant 0 : i32
    %16 = vector.broadcast %c0_i32_8 : i32 to vector<8x64xi32>
    %17 = arith.cmpi slt, %13, %16 : vector<8x64xi32>
    %c0_i32_9 = arith.constant 0 : i32
    %18 = arith.cmpi slt, %11, %c0_i32_9 : i32
    %19 = vector.broadcast %18 : i1 to vector<8x64xi1>
    %20 = vector.broadcast %19 : vector<8x64xi1> to vector<8x64xi1>
    %21 = arith.xori %17, %20 : vector<8x64xi1>
    %22 = arith.andi %21, %15 : vector<8x64xi1>
    %23 = vector.broadcast %11 : i32 to vector<8x64xi32>
    %24 = arith.addi %13, %23 : vector<8x64xi32>
    %25 = arith.select %22, %24, %13 : vector<8x64xi1>, vector<8x64xi32>
    %c7_i32 = arith.constant 7 : i32
    %26 = vector.broadcast %c7_i32 : i32 to vector<8x64xi32>
    %27 = arith.cmpi slt, %25, %26 : vector<8x64xi32>
    %cst_10 = arith.constant 0xFF800000 : f32
    %28 = vector.broadcast %cst_10 : f32 to vector<8x1xf32>
    %29 = vector.extract_strided_slice %8 {offsets = [0, 1], sizes = [8, 63], strides = [1, 1]} : vector<8x64xf32> to vector<8x63xf32>
    %30 = tpu.concatenate %29, %28 in 1 : vector<8x63xf32>, vector<8x1xf32> -> vector<8x64xf32>
    %cst_11 = arith.constant 0xFF800000 : f32
    %31 = vector.broadcast %cst_11 : f32 to vector<8x64xf32>
    %32 = arith.select %27, %30, %31 : vector<8x64xi1>, vector<8x64xf32>
    %33 = arith.maximumf %8, %32 : vector<8x64xf32>
    %c1_i32_12 = arith.constant 1 : i32
    %34 = vector.broadcast %c1_i32_12 : i32 to vector<8x64xi32>
    %35 = arith.cmpi sge, %25, %34 : vector<8x64xi32>
    %cst_13 = arith.constant 0xFF800000 : f32
    %36 = vector.broadcast %cst_13 : f32 to vector<8x1xf32>
    %37 = vector.extract_strided_slice %8 {offsets = [0, 0], sizes = [8, 63], strides = [1, 1]} : vector<8x64xf32> to vector<8x63xf32>
    %38 = tpu.concatenate %36, %37 in 1 : vector<8x1xf32>, vector<8x63xf32> -> vector<8x64xf32>
    %cst_14 = arith.constant 0xFF800000 : f32
    %39 = vector.broadcast %cst_14 : f32 to vector<8x64xf32>
    %40 = arith.select %35, %38, %39 : vector<8x64xi1>, vector<8x64xf32>
    %41 = arith.maximumf %33, %40 : vector<8x64xf32>
    %c6_i32 = arith.constant 6 : i32
    %42 = vector.broadcast %c6_i32 : i32 to vector<8x64xi32>
    %43 = arith.cmpi slt, %25, %42 : vector<8x64xi32>
    %cst_15 = arith.constant 0xFF800000 : f32
    %44 = vector.broadcast %cst_15 : f32 to vector<8x2xf32>
    %45 = vector.extract_strided_slice %8 {offsets = [0, 2], sizes = [8, 62], strides = [1, 1]} : vector<8x64xf32> to vector<8x62xf32>
    %46 = tpu.concatenate %45, %44 in 1 : vector<8x62xf32>, vector<8x2xf32> -> vector<8x64xf32>
    %cst_16 = arith.constant 0xFF800000 : f32
    %47 = vector.broadcast %cst_16 : f32 to vector<8x64xf32>
    %48 = arith.select %43, %46, %47 : vector<8x64xi1>, vector<8x64xf32>
    %49 = arith.maximumf %41, %48 : vector<8x64xf32>
    %c2_i32 = arith.constant 2 : i32
    %50 = vector.broadcast %c2_i32 : i32 to vector<8x64xi32>
    %51 = arith.cmpi sge, %25, %50 : vector<8x64xi32>
    %cst_17 = arith.constant 0xFF800000 : f32
    %52 = vector.broadcast %cst_17 : f32 to vector<8x2xf32>
    %53 = vector.extract_strided_slice %8 {offsets = [0, 0], sizes = [8, 62], strides = [1, 1]} : vector<8x64xf32> to vector<8x62xf32>
    %54 = tpu.concatenate %52, %53 in 1 : vector<8x2xf32>, vector<8x62xf32> -> vector<8x64xf32>
    %cst_18 = arith.constant 0xFF800000 : f32
    %55 = vector.broadcast %cst_18 : f32 to vector<8x64xf32>
    %56 = arith.select %51, %54, %55 : vector<8x64xi1>, vector<8x64xf32>
    %57 = arith.maximumf %49, %56 : vector<8x64xf32>
    %c5_i32 = arith.constant 5 : i32
    %58 = vector.broadcast %c5_i32 : i32 to vector<8x64xi32>
    %59 = arith.cmpi slt, %25, %58 : vector<8x64xi32>
    %cst_19 = arith.constant 0xFF800000 : f32
    %60 = vector.broadcast %cst_19 : f32 to vector<8x3xf32>
    %61 = vector.extract_strided_slice %8 {offsets = [0, 3], sizes = [8, 61], strides = [1, 1]} : vector<8x64xf32> to vector<8x61xf32>
    %62 = tpu.concatenate %61, %60 in 1 : vector<8x61xf32>, vector<8x3xf32> -> vector<8x64xf32>
    %cst_20 = arith.constant 0xFF800000 : f32
    %63 = vector.broadcast %cst_20 : f32 to vector<8x64xf32>
    %64 = arith.select %59, %62, %63 : vector<8x64xi1>, vector<8x64xf32>
    %65 = arith.maximumf %57, %64 : vector<8x64xf32>
    %c3_i32 = arith.constant 3 : i32
    %66 = vector.broadcast %c3_i32 : i32 to vector<8x64xi32>
    %67 = arith.cmpi sge, %25, %66 : vector<8x64xi32>
    %cst_21 = arith.constant 0xFF800000 : f32
    %68 = vector.broadcast %cst_21 : f32 to vector<8x3xf32>
    %69 = vector.extract_strided_slice %8 {offsets = [0, 0], sizes = [8, 61], strides = [1, 1]} : vector<8x64xf32> to vector<8x61xf32>
    %70 = tpu.concatenate %68, %69 in 1 : vector<8x3xf32>, vector<8x61xf32> -> vector<8x64xf32>
    %cst_22 = arith.constant 0xFF800000 : f32
    %71 = vector.broadcast %cst_22 : f32 to vector<8x64xf32>
    %72 = arith.select %67, %70, %71 : vector<8x64xi1>, vector<8x64xf32>
    %73 = arith.maximumf %65, %72 : vector<8x64xf32>
    %cst_23 = arith.constant 0xFF800000 : f32
    %74 = vector.broadcast %cst_23 : f32 to vector<8x8xf32>
    %75 = vector.extract_strided_slice %73 {offsets = [0, 8], sizes = [8, 56], strides = [1, 1]} : vector<8x64xf32> to vector<8x56xf32>
    %76 = tpu.concatenate %75, %74 in 1 : vector<8x56xf32>, vector<8x8xf32> -> vector<8x64xf32>
    %77 = arith.maximumf %73, %76 : vector<8x64xf32>
    %cst_24 = arith.constant 0xFF800000 : f32
    %78 = vector.broadcast %cst_24 : f32 to vector<8x8xf32>
    %79 = vector.extract_strided_slice %73 {offsets = [0, 0], sizes = [8, 56], strides = [1, 1]} : vector<8x64xf32> to vector<8x56xf32>
    %80 = tpu.concatenate %78, %79 in 1 : vector<8x8xf32>, vector<8x56xf32> -> vector<8x64xf32>
    %81 = arith.maximumf %77, %80 : vector<8x64xf32>
    %cst_25 = arith.constant 0xFF800000 : f32
    %82 = vector.broadcast %cst_25 : f32 to vector<8x16xf32>
    %83 = vector.extract_strided_slice %73 {offsets = [0, 16], sizes = [8, 48], strides = [1, 1]} : vector<8x64xf32> to vector<8x48xf32>
    %84 = tpu.concatenate %83, %82 in 1 : vector<8x48xf32>, vector<8x16xf32> -> vector<8x64xf32>
    %85 = arith.maximumf %81, %84 : vector<8x64xf32>
    %cst_26 = arith.constant 0xFF800000 : f32
    %86 = vector.broadcast %cst_26 : f32 to vector<8x16xf32>
    %87 = vector.extract_strided_slice %73 {offsets = [0, 0], sizes = [8, 48], strides = [1, 1]} : vector<8x64xf32> to vector<8x48xf32>
    %88 = tpu.concatenate %86, %87 in 1 : vector<8x16xf32>, vector<8x48xf32> -> vector<8x64xf32>
    %89 = arith.maximumf %85, %88 : vector<8x64xf32>
    %cst_27 = arith.constant 0xFF800000 : f32
    %90 = vector.broadcast %cst_27 : f32 to vector<8x24xf32>
    %91 = vector.extract_strided_slice %73 {offsets = [0, 24], sizes = [8, 40], strides = [1, 1]} : vector<8x64xf32> to vector<8x40xf32>
    %92 = tpu.concatenate %91, %90 in 1 : vector<8x40xf32>, vector<8x24xf32> -> vector<8x64xf32>
    %93 = arith.maximumf %89, %92 : vector<8x64xf32>
    %cst_28 = arith.constant 0xFF800000 : f32
    %94 = vector.broadcast %cst_28 : f32 to vector<8x24xf32>
    %95 = vector.extract_strided_slice %73 {offsets = [0, 0], sizes = [8, 40], strides = [1, 1]} : vector<8x64xf32> to vector<8x40xf32>
    %96 = tpu.concatenate %94, %95 in 1 : vector<8x24xf32>, vector<8x40xf32> -> vector<8x64xf32>
    %97 = arith.maximumf %93, %96 : vector<8x64xf32>
    %c0_29 = arith.constant 0 : index
    %c0_30 = arith.constant 0 : index
    %c0_31 = arith.constant 0 : index
    %98 = vector.load %arg4[%c0_29, %c0_30, %c0_31] : memref<1x8x64xf32, #tpu.memory_space<vmem>>, vector<1x8x64xf32>
    %99 = vector.shape_cast %98 : vector<1x8x64xf32> to vector<8x64xf32>
    %100 = vector.shape_cast %97 : vector<8x64xf32> to vector<1x8x64xf32>
    tpu.vector_store %arg4[%c0_29, %c0_30, %c0_31], %100 {strides = array<i32>} : memref<1x8x64xf32, #tpu.memory_space<vmem>>, vector<1x8x64xf32>,
    return
  }
  func.func @transform_0(%arg0: i32) -> (i32, i32, i32) {
    %c0_i32 = arith.constant 0 : i32
    %c0_i32_0 = arith.constant 0 : i32
    %c0_i32_1 = arith.constant 0 : i32
    return %arg0, %c0_i32, %c0_i32_0 : i32, i32, i32
  }
  func.func @transform_1(%arg0: i32) -> (i32, i32) {
    %c0_i32 = arith.constant 0 : i32
    %c0_i32_0 = arith.constant 0 : i32
    %c0_i32_1 = arith.constant 0 : i32
    return %c0_i32, %c0_i32_0 : i32, i32
  }
  func.func @transform_2(%arg0: i32) -> (i32, i32) {
    %c0_i32 = arith.constant 0 : i32
    %c0_i32_0 = arith.constant 0 : i32
    %c0_i32_1 = arith.constant 0 : i32
    return %c0_i32, %c0_i32_0 : i32, i32
  }
  func.func @transform_3(%arg0: i32) -> (i32, i32, i32) {
    %c0_i32 = arith.constant 0 : i32
    %c0_i32_0 = arith.constant 0 : i32
    %c0_i32_1 = arith.constant 0 : i32
    return %arg0, %c0_i32, %c0_i32_0 : i32, i32, i32
  }
}

</mosaic_0001>

<llo_original>
// kernel: tpu_custom_call.1
$region0: #{tpu_custom_call.1}
  #allocation0 [shape = 'u32[]', space=smem, size = 0x4, offset = 0x4, fixed_abs, tag = 'smem constant byte address 0x4 - core index']
  #allocation1 [shape = 'u32[72,128]{1,0:T(1,128)}', space=vmem, size = 0x9000, scoped, tag = 'internal scratch']
  %s0 = inlined_call_operand.hbm [shape: f32[2,8,64], index: 0, kind: input, shape index: {}]
  %s1 = inlined_call_operand.vmem [shape: f32[8,8], index: 1, kind: input, shape index: {}]
  %s2 = inlined_call_operand.vmem [shape: f32[8,1], index: 2, kind: input, shape index: {}]
  %s3 = inlined_call_operand.hbm [shape: f32[2,8,64], index: 3, kind: output, shape index: {}]
  %s4 = sld [smem:[#allocation0]]
  $region49: #{tpu_custom_call.1} parent=0
    _
  %s6 = ssub.s32 1, %s4
  %s7 = scalar_select 0, %s6, %s4
  $region1: #{tpu_custom_call.1} parent=0
    #allocation2 [shape = 'u8[8192]{0}', space=vmem, size = 0x2000, scoped, tag = 'input window, operand 0']
    #allocation3 [shape = 's32[2]{0}', space=sflag, size = 0x8, scoped, tag = 'scoped memory for tpu_custom_call.1']
    #allocation4 [shape = 's32[2]{0}', space=sflag, size = 0x8, scoped, tag = 'scoped memory for tpu_custom_call.1']
    #allocation5 [shape = 'u8[8192]{0}', space=vmem, size = 0x2000, scoped, tag = 'output window, operand 0']
    %8 = vsyncpa [#allocation3], 0
    %s9 = scalar_lea.sflag [#allocation3], 1
    %10 = vsyncpa %s9, 0
    %11 = vsyncpa [#allocation4], 0
    %s12 = scalar_lea.sflag [#allocation4], 1
    %13 = vsyncpa %s12, 0
    loop: start=0, step=1, limit=4
    $region2: #{tpu_custom_call.1} parent=1 // loop_pre_header
      _
    $region3: #{tpu_custom_call.1} parent=1 // loop_header
      %s15 = sphi 0, %s19
      %p16 = scmp.ge.s32.totalorder %s15, 4
      %s25 = sphi 0, %s27
      %s28 = sphi 0, %s25
      %s29 = sphi 0, %s28
      %s45 = sphi 0, %s29
      %s49 = sphi 0, %s49
      %s51 = sphi 0, %s49
      %s52 = sphi 0, %s51
      %s66 = sphi 0, %s52
      %s70 = sphi 0, %s70
      %s72 = sphi 0, %s70
      %s73 = sphi 0, %s72
      %s87 = sphi 0, %s73
      %s93 = sphi 0, %s95
      %s96 = sphi 0, %s93
      %s97 = sphi 0, %s96
      %s113 = sphi 0, %s97
    $region4: #{tpu_custom_call.1} parent=1 // loop_header_branch
      %18 = sbr.rel (%p16) target = $region8
    $region5: #{tpu_custom_call.1} parent=1 // loop_body
      %s20 = ssub.s32 %s15, 1
      %s21 = ssub.s32 %s15, 2
      %s22 = sadd.s32 %s15, 1
      %s23 = ssub.s32 %s15, %s22
      %p24 = scmp.eq.s32.totalorder %s23, 0
      %s26 = sadd.s32 %s25, 1
      %s27 = scalar_select %p24, %s25, %s26
      %p30 = pneg %p24
      %p31 = scmp.eq.s32.totalorder %s15, 1
      %p32 = por %p30, %p31
      %p33 = scmp.ne.s32.totalorder %s25, %s28
      %p34 = scmp.eq.s32.totalorder %s15, 0
      %p35 = por %p33, %p34
      %p36 = scmp.ne.s32.totalorder %s25, %s28
      %p37 = scmp.eq.s32.totalorder %s20, 1
      %p38 = por %p36, %p37
      %p39 = scmp.ne.s32.totalorder %s28, %s29
      %p40 = scmp.eq.s32.totalorder %s20, 0
      %p41 = por %p39, %p40
      %p42 = scmp.ne.s32.totalorder %s28, %s29
      %p43 = scmp.eq.s32.totalorder %s21, 1
      %p44 = por %p42, %p43
      %p46 = scmp.ne.s32.totalorder %s29, %s45
      %p47 = scmp.eq.s32.totalorder %s21, 0
      %p48 = por %p46, %p47
      %s50 = sadd.s32 %s49, 1
      %p53 = scmp.eq.s32.totalorder %s15, 1
      %p54 = scmp.ne.s32.totalorder %s49, %s51
      %p55 = scmp.eq.s32.totalorder %s15, 0
      %p56 = por %p54, %p55
      %p57 = scmp.ne.s32.totalorder %s49, %s51
      %p58 = scmp.eq.s32.totalorder %s20, 1
      %p59 = por %p57, %p58
      %p60 = scmp.ne.s32.totalorder %s51, %s52
      %p61 = scmp.eq.s32.totalorder %s20, 0
      %p62 = por %p60, %p61
      %p63 = scmp.ne.s32.totalorder %s51, %s52
      %p64 = scmp.eq.s32.totalorder %s21, 1
      %p65 = por %p63, %p64
      %p67 = scmp.ne.s32.totalorder %s52, %s66
      %p68 = scmp.eq.s32.totalorder %s21, 0
      %p69 = por %p67, %p68
      %s71 = sadd.s32 %s70, 1
      %p74 = scmp.eq.s32.totalorder %s15, 1
      %p75 = scmp.ne.s32.totalorder %s70, %s72
      %p76 = scmp.eq.s32.totalorder %s15, 0
      %p77 = por %p75, %p76
      %p78 = scmp.ne.s32.totalorder %s70, %s72
      %p79 = scmp.eq.s32.totalorder %s20, 1
      %p80 = por %p78, %p79
      %p81 = scmp.ne.s32.totalorder %s72, %s73
      %p82 = scmp.eq.s32.totalorder %s20, 0
      %p83 = por %p81, %p82
      %p84 = scmp.ne.s32.totalorder %s72, %s73
      %p85 = scmp.eq.s32.totalorder %s21, 1
      %p86 = por %p84, %p85
      %p88 = scmp.ne.s32.totalorder %s73, %s87
      %p89 = scmp.eq.s32.totalorder %s21, 0
      %p90 = por %p88, %p89
      %s91 = ssub.s32 %s15, %s22
      %p92 = scmp.eq.s32.totalorder %s91, 0
      %s94 = sadd.s32 %s93, 1
      %s95 = scalar_select %p92, %s93, %s94
      %p98 = pneg %p92
      %p99 = scmp.eq.s32.totalorder %s15, 1
      %p100 = por %p98, %p99
      %p101 = scmp.ne.s32.totalorder %s93, %s96
      %p102 = scmp.eq.s32.totalorder %s15, 0
      %p103 = por %p101, %p102
      %p104 = scmp.ne.s32.totalorder %s93, %s96
      %p105 = scmp.eq.s32.totalorder %s20, 1
      %p106 = por %p104, %p105
      %p107 = scmp.ne.s32.totalorder %s96, %s97
      %p108 = scmp.eq.s32.totalorder %s20, 0
      %p109 = por %p107, %p108
      %p110 = scmp.ne.s32.totalorder %s96, %s97
      %p111 = scmp.eq.s32.totalorder %s21, 1
      %p112 = por %p110, %p111
      %p114 = scmp.ne.s32.totalorder %s97, %s113
      %p115 = scmp.eq.s32.totalorder %s21, 0
      %p116 = por %p114, %p115
      %p117 = scmp.le.s32.totalorder 1, %s15
      %p118 = scmp.lt.s32.totalorder %s15, 3
      %p119 = pnand %p117, %p118
      %p120 = pneg %p119
      // Predicated region
      $region9: #{tpu_custom_call.1} parent=5 // pred_check
        _
      $region10: #{tpu_custom_call.1} parent=5 // pred_check_branch
        %122 = sbr.rel (%p119) target = $region12
      $region11: #{tpu_custom_call.1} parent=5 // pred_region
        %s123 = ssub.s32 %s15, 1
        // Predicated region
        $region13: #{tpu_custom_call.1} parent=11 // pred_check
          %p124 = pneg %p62
        $region14: #{tpu_custom_call.1} parent=11 // pred_check_branch
          %126 = sbr.rel (%p124) target = $region16
        $region15: #{tpu_custom_call.1} parent=11 // pred_region
          _
        $region16: #{tpu_custom_call.1} parent=11 // pred_fallthru
          _
        // Predicated region
        $region17: #{tpu_custom_call.1} parent=11 // pred_check
          %p127 = pneg %p83
        $region18: #{tpu_custom_call.1} parent=11 // pred_check_branch
          %129 = sbr.rel (%p127) target = $region20
        $region19: #{tpu_custom_call.1} parent=11 // pred_region
          _
        $region20: #{tpu_custom_call.1} parent=11 // pred_fallthru
          _
      $region12: #{tpu_custom_call.1} parent=5 // pred_fallthru
        _
      %p130 = scmp.lt.s32.totalorder %s15, 2
      // Predicated region
      $region21: #{tpu_custom_call.1} parent=5 // pred_check
        %p131 = pneg %p130
      $region22: #{tpu_custom_call.1} parent=5 // pred_check_branch
        %133 = sbr.rel (%p131) target = $region24
      $region23: #{tpu_custom_call.1} parent=5 // pred_region
        // Predicated region
        $region25: #{tpu_custom_call.1} parent=23 // pred_check
          %p134 = pneg %p35
        $region26: #{tpu_custom_call.1} parent=23 // pred_check_branch
          %136 = sbr.rel (%p134) target = $region28
        $region27: #{tpu_custom_call.1} parent=23 // pred_region
          %s137 = sand.u32 %s25, 1
          %s138 = scalar_lea.sflag [#allocation3], %s137
          %s139 = sand.u32 %s25, 1
          %s140 = smul.addr %s139, 8
          %s141 = scalar_lea.vmem [#allocation2], %s140
          %143 = vsyncadd %s138, 0
          %s144 = smul.addr %s15, 8
          %s145 = scalar_lea.hbm %s0, %s144
          %s147 = sshll.u32 %s145, 4
          %s148 = int_to_ptr.hbm [resolvable:$true] %s147
          %s149 = sshll.u32 %s141, 4
          %s150 = int_to_ptr.vmem [resolvable:$true] %s149
          %152 = dma.hbm_to_vmem [thread:$0]  %s148, 128, %s150, %s138
        $region28: #{tpu_custom_call.1} parent=23 // pred_fallthru
          _
      $region24: #{tpu_custom_call.1} parent=5 // pred_fallthru
        _
      %p153 = scmp.le.s32.totalorder 1, %s15
      %p154 = scmp.lt.s32.totalorder %s15, 3
      %p155 = pnand %p153, %p154
      %p156 = pneg %p155
      // Predicated region
      $region29: #{tpu_custom_call.1} parent=5 // pred_check
        _
      $region30: #{tpu_custom_call.1} parent=5 // pred_check_branch
        %158 = sbr.rel (%p155) target = $region32
      $region31: #{tpu_custom_call.1} parent=5 // pred_region
        %s159 = ssub.s32 %s15, 1
        %s160 = sand.u32 %s28, 1
        %s161 = scalar_lea.sflag [#allocation3], %s160
        %s162 = sand.u32 %s28, 1
        %s163 = smul.addr %s162, 8
        %s164 = scalar_lea.vmem [#allocation2], %s163
        // Predicated region
        $region33: #{tpu_custom_call.1} parent=31 // pred_check
          %p165 = pneg %p41
        $region34: #{tpu_custom_call.1} parent=31 // pred_check_branch
          %167 = sbr.rel (%p165) target = $region36
        $region35: #{tpu_custom_call.1} parent=31 // pred_region
          %169 = dma.done %s161, 128
        $region36: #{tpu_custom_call.1} parent=31 // pred_fallthru
          _
        %s170 = sand.u32 %s28, 1
        %s171 = scalar_lea.sflag [#allocation3], %s170
        %s172 = sand.u32 %s28, 1
        %s173 = smul.addr %s172, 8
        %s174 = scalar_lea.vmem [#allocation2], %s173
        %p175 = pneg %p41
        %p176 = pneg %p38
        %p177 = pneg %p62
        %p178 = pneg %p59
        %p179 = pneg %p83
        %p180 = pneg %p80
        %p181 = pneg %p109
        %p182 = pneg %p106
        %s183 = sand.u32 %s96, 1
        %s184 = scalar_lea.sflag [#allocation4], %s183
        %s185 = sand.u32 %s96, 1
        %s186 = smul.addr %s185, 8
        %s187 = scalar_lea.vmem [#allocation5], %s186
        %v188 = vld [vmem:[%s164] sm:$0xff]
        %v189 = vld [vmem:[%s1] sm:$0xff]
        %v190 = vld [vmem:[%s2] sm:$0xff]
        %192 = vset.pattern.permute.xlu0 0
        %193 = vperm.xlu0 %192, %v190
        %v194 = vpop.permute.xlu0 %193
        %vm196 = vcmask 64512
        %v198 = vsel %vm196, %v189, 0
        %200 = vmatpush.msra.mxu0 0.0
        %201 = vmatpush.msra.mxu0 0.0
        %202 = vmatpush.msra.mxu0 0.0
        %203 = vmatpush.msra.mxu0 0.0
        %204 = vmatpush.msra.mxu0 0.0
        %205 = vmatpush.msra.mxu0 0.0
        %206 = vmatpush.msra.mxu0 0.0
        %207 = vmatpush.msra.mxu0 0.0
        %208 = vmatpush.msra.mxu0 0.0
        %209 = vmatpush.msra.mxu0 0.0
        %210 = vmatpush.msra.mxu0 0.0
        %211 = vmatpush.msra.mxu0 0.0
        %212 = vmatpush.msra.mxu0 0.0
        %213 = vmatpush.msra.mxu0 0.0
        %214 = vmatpush.msra.mxu0 0.0
        %215 = vmatpush.msra.mxu0 %v188
        %216 = vmatmul.f32.gmra.mxu0 %v198
        %v217 = vpop.f32.mrf.mxu0
        %v218 = vadd.f32 %v194, %v217
        %219 = vdwg.mxu0
        %v220 = vmax.f32 %v218, 0.0
        %v221 = vlaneseq
        %v222 = vand.u32 %v221, 127
        %vm223 = vcmp.lt.s32.totalorder %v222, 0
        %v224 = vsub.s32 0, %v222
        %v225 = vsel %vm223, %v224, %v222
        %v226 = vshrl.u32 %v225, 3
        %v227 = vand.u32 %v225, 7
        %v228 = vsub.s32 0, %v227
        %v229 = vsel %vm223, %v228, %v227
        %vm230 = vcmp.ne.s32.totalorder %v229, 0
        %vm231 = vcmp.lt.s32.totalorder %v229, 0
        %vm232 = vmand %vm231, %vm230
        %v233 = vadd.s32 %v229, 8
        %v234 = vsel %vm232, %v233, %v229
        %vm235 = vcmp.lt.s32.totalorder %v234, 7
        %237 = vrot.lane.b32.xlu0 %v220, 127
        %v238 = vpop.permute.xlu0 %237
        %vm240 = vcmask 515072
        %v241 = vsel %vm240, %v238, -inf
        %v242 = vsel %vm235, %v241, -inf
        %v243 = vmax.f32 %v220, %v242
        %vm244 = vcmp.ge.s32.totalorder %v234, 1
        %245 = vrot.lane.b32.xlu0 %v220, 1
        %v246 = vpop.permute.xlu0 %245
        %vm248 = vcmask 7168
        %v249 = vsel %vm248, -inf, %v246
        %v250 = vsel %vm244, %v249, -inf
        %v251 = vmax.f32 %v243, %v250
        %vm252 = vcmp.lt.s32.totalorder %v234, 6
        %253 = vrot.lane.b32.xlu0 %v220, 126
        %v254 = vpop.permute.xlu0 %253
        %vm256 = vcmask 506880
        %v257 = vsel %vm256, %v254, -inf
        %v258 = vsel %vm252, %v257, -inf
        %v259 = vmax.f32 %v251, %v258
        %vm260 = vcmp.ge.s32.totalorder %v234, 2
        %261 = vrot.lane.b32.xlu0 %v220, 2
        %v262 = vpop.permute.xlu0 %261
        %vm264 = vcmask 15360
        %v265 = vsel %vm264, -inf, %v262
        %v266 = vsel %vm260, %v265, -inf
        %v267 = vmax.f32 %v259, %v266
        %vm268 = vcmp.lt.s32.totalorder %v234, 5
        %269 = vrot.lane.b32.xlu0 %v220, 125
        %v270 = vpop.permute.xlu0 %269
        %vm272 = vcmask 498688
        %v273 = vsel %vm272, %v270, -inf
        %v274 = vsel %vm268, %v273, -inf
        %v275 = vmax.f32 %v267, %v274
        %vm276 = vcmp.ge.s32.totalorder %v234, 3
        %277 = vrot.lane.b32.xlu0 %v220, 3
        %v278 = vpop.permute.xlu0 %277
        %vm280 = vcmask 23552
        %v281 = vsel %vm280, -inf, %v278
        %v282 = vsel %vm276, %v281, -inf
        %v283 = vmax.f32 %v275, %v282
        %285 = vrot.lane.b32.xlu0 %v283, 120
        %v286 = vpop.permute.xlu0 %285
        %vm288 = vcmask 457728
        %v289 = vsel %vm288, %v286, -inf
        %v290 = vmax.f32 %v283, %v289
        %291 = vrot.lane.b32.xlu0 %v283, 8
        %v292 = vpop.permute.xlu0 %291
        %v294 = vsel %vm196, -inf, %v292
        %v295 = vmax.f32 %v290, %v294
        %296 = vrot.lane.b32.xlu0 %v283, 112
        %v297 = vpop.permute.xlu0 %296
        %vm299 = vcmask 392192
        %v300 = vsel %vm299, %v297, -inf
        %v301 = vmax.f32 %v295, %v300
        %302 = vrot.lane.b32.xlu0 %v283, 16
        %v303 = vpop.permute.xlu0 %302
        %vm305 = vcmask 130048
        %v306 = vsel %vm305, -inf, %v303
        %v307 = vmax.f32 %v301, %v306
        %308 = vrot.lane.b32.xlu0 %v283, 104
        %v309 = vpop.permute.xlu0 %308
        %vm311 = vcmask 326656
        %v312 = vsel %vm311, %v309, -inf
        %v313 = vmax.f32 %v307, %v312
        %314 = vrot.lane.b32.xlu0 %v283, 24
        %v315 = vpop.permute.xlu0 %314
        %vm317 = vcmask 195584
        %v318 = vsel %vm317, -inf, %v315
        %v319 = vmax.f32 %v313, %v318
        %vm320 = vcmask 523264
        %321 = vst.msk [vmem:[%s187] sm:$0xff] %vm320, %v319
        %s322 = sand.u32 %s96, 1
        %s323 = scalar_lea.sflag [#allocation4], %s322
        %s324 = sand.u32 %s96, 1
        %s325 = smul.addr %s324, 8
        %s326 = scalar_lea.vmem [#allocation5], %s325
        // Predicated region
        $region37: #{tpu_custom_call.1} parent=31 // pred_check
          %p327 = pneg %p106
        $region38: #{tpu_custom_call.1} parent=31 // pred_check_branch
          %329 = sbr.rel (%p327) target = $region40
        $region39: #{tpu_custom_call.1} parent=31 // pred_region
          %331 = vsyncadd %s323, 0
          %s332 = smul.addr %s20, 8
          %s333 = scalar_lea.hbm %s3, %s332
          %s335 = sshll.u32 %s326, 4
          %s336 = int_to_ptr.vmem [resolvable:$true] %s335
          %s337 = sshll.u32 %s333, 4
          %s338 = int_to_ptr.hbm [resolvable:$true] %s337
          %340 = dma.vmem_to_hbm [thread:$0]  %s336, 128, %s338, %s323
        $region40: #{tpu_custom_call.1} parent=31 // pred_fallthru
          _
      $region32: #{tpu_custom_call.1} parent=5 // pred_fallthru
        _
      %p341 = scmp.le.s32.totalorder 2, %s15
      // Predicated region
      $region41: #{tpu_custom_call.1} parent=5 // pred_check
        %p342 = pneg %p341
      $region42: #{tpu_custom_call.1} parent=5 // pred_check_branch
        %344 = sbr.rel (%p342) target = $region44
      $region43: #{tpu_custom_call.1} parent=5 // pred_region
        %s345 = ssub.s32 %s15, 2
        // Predicated region
        $region45: #{tpu_custom_call.1} parent=43 // pred_check
          %p346 = pneg %p112
        $region46: #{tpu_custom_call.1} parent=43 // pred_check_branch
          %348 = sbr.rel (%p346) target = $region48
        $region47: #{tpu_custom_call.1} parent=43 // pred_region
          %s349 = sand.u32 %s97, 1
          %s350 = scalar_lea.sflag [#allocation4], %s349
          %s351 = sand.u32 %s97, 1
          %s352 = smul.addr %s351, 8
          %s353 = scalar_lea.vmem [#allocation5], %s352
          %355 = dma.done %s350, 128
        $region48: #{tpu_custom_call.1} parent=43 // pred_fallthru
          _
      $region44: #{tpu_custom_call.1} parent=5 // pred_fallthru
        _
    $region6: #{tpu_custom_call.1} parent=1 // loop_footer
      %s19 = sadd.s32 1, %s15
    $region7: #{tpu_custom_call.1} parent=1 // loop_footer_branch
      %14 = sbr.rel target = $region3
    $region8: #{tpu_custom_call.1} parent=1 // loop_exit
      _
    %356 = vsyncpa [#allocation3], 1
    %s357 = scalar_lea.sflag [#allocation3], 1
    %358 = vsyncpa %s357, 1
    %359 = vsyncpa [#allocation4], 1
    %s360 = scalar_lea.sflag [#allocation4], 1
    %361 = vsyncpa %s360, 1

</llo_original>
